<compile_context>
chip_gen: v7x
topology: tpu7x:2x2x1
jax: 0.10.0
libtpu: 0.0.40
codegen_flags: <defaults>
</compile_context>

<pallas_src>
import jax
import jax.numpy as jnp
from jax.experimental import pallas as pl
from jax.experimental.pallas import tpu as pltpu


def _round_up(x: int, m: int) -> int:
    return ((x + m - 1) // m) * m


def _sageconv_kernel(adj_ref, hcat_ref, h_i_ref, w_self_ref, w_stack_ref,
                     bias_ref, out_ref, acc_ref):
    """Fused SAGEConv (mean) forward, tiled over (row-tile i, K-tile k).

    adj_ref    : (TM, TK)   bf16 adjacency tile (A[i, j] = edge j -> i)
    hcat_ref   : (TK, W)    bf16 packed features: [ones | h_hi | h_lo | 0-pad]
    h_i_ref    : (TM, Fin)  f32 node features, row-tile (self projection)
    w_self_ref : (Fin, Hp)  f32 fc_self weight, transposed + lane-padded
    w_stack_ref: (W, Hp)    f32 [0-row | W_neigh^T | W_neigh^T | 0-pad]
    bias_ref   : (1, Hp)    f32 bias, lane-padded
    out_ref    : (TM, Hp)   f32 output tile
    acc_ref    : (TM, W)    f32 scratch accumulator ([deg | sum_hi | sum_lo])
    """
    k = pl.program_id(1)

    @pl.when(k == 0)
    def _init():
        acc_ref[...] = jnp.zeros_like(acc_ref)

    # Native bf16 x bf16 matmul on the MXU, f32 accumulation. No VPU casts.
    # Column 0 of hcat is all-ones, so acc[:, 0] accumulates the in-degree.
    acc_ref[...] += jnp.dot(adj_ref[...], hcat_ref[...],
                            preferred_element_type=jnp.float32)

    @pl.when(k == pl.num_programs(1) - 1)
    def _finalize():
        acc = acc_ref[...]
        deg = acc[:, 0:1]                       # in-degree, exact (f32 int sums)
        inv_deg = 1.0 / jnp.maximum(deg, 1.0)   # once per row tile -> exact div

        proj_self = jnp.dot(h_i_ref[...], w_self_ref[...],
                            preferred_element_type=jnp.float32)
        # Single stacked matmul covers both hi and lo halves; row 0 of
        # w_stack is zero so the degree column does not contaminate it.
        # Row scaling commutes:  diag(d) @ (acc @ W) == (diag(d) @ acc) @ W.
        proj_neigh = jnp.dot(acc, w_stack_ref[...],
                             preferred_element_type=jnp.float32)
        out = proj_self + proj_neigh * inv_deg + bias_ref[...]
        out_ref[...] = out.astype(out_ref.dtype)


def _pick_tiles(n: int, block_rows, block_k):
    if block_k is None:
        tk = min(2048, _round_up(n, 128))
    else:
        tk = int(block_k)
    assert tk % 128 == 0, "block_k must be a multiple of 128"

    if block_rows is None:
        # Aim for >= 2 row tiles (so v7x's two TensorCores both get work),
        # capped at 512 rows per tile.
        tm = min(512, _round_up(max(n // 2, 8), 8))
    else:
        tm = int(block_rows)
    assert tm % 8 == 0, "block_rows must be a multiple of 8"
    return tm, tk


def sageconv_mean(adj, h, w_self, w_neigh, bias, *, block_rows=None, block_k=None):
    """Dense-adjacency SAGEConv (mean aggregator).

    adj    : (N, N)      0/1 adjacency, A[i, j] = 1 iff edge j -> i
    h      : (N, Fin)    node features
    w_self : (H, Fin)    PyTorch nn.Linear weight layout
    w_neigh: (H, Fin)
    bias   : (H,)
    returns: (N, H)      float32
    """
    n, fin = h.shape
    hidden = w_self.shape[0]

    tm, tk = _pick_tiles(n, block_rows, block_k)
    n_rows_p = _round_up(n, tm)        # padded row extent (output rows)
    n_k_p = _round_up(n, tk)           # padded K extent (neighbor axis)
    hp = _round_up(hidden, 128)        # lane-dense output / weight last dim
    w_cat = _round_up(2 * fin + 1, 128)  # packed-feature width: ones|hi|lo|pad

    # ---- adjacency: straight bf16 cast ({0,1} exact), pad only if needed ----
    adj_b = adj.astype(jnp.bfloat16)
    if n_rows_p != n or n_k_p != n:
        adj_b = jnp.pad(adj_b, ((0, n_rows_p - n), (0, n_k_p - n)))

    # ---- packed aggregation operand: [ones | h_hi | h_lo], bf16 -------------
    h_f32 = h.astype(jnp.float32)
    h_hi = h_f32.astype(jnp.bfloat16)
    h_lo = (h_f32 - h_hi.astype(jnp.float32)).astype(jnp.bfloat16)
    ones_col = jnp.ones((n, 1), jnp.bfloat16)
    hcat = jnp.concatenate([ones_col, h_hi, h_lo], axis=1)      # (n, 2*fin+1)
    if n_k_p != n or w_cat != 2 * fin + 1:
        hcat = jnp.pad(hcat, ((0, n_k_p - n), (0, w_cat - (2 * fin + 1))))

    # ---- self-projection operand stays f32 (tiny stream, exact) -------------
    h_self = h_f32
    if n_rows_p != n:
        h_self = jnp.pad(h_self, ((0, n_rows_p - n), (0, 0)))

    # ---- weights / bias: transposed, lane-padded; W_neigh stacked twice -----
    w_self_t = jnp.zeros((fin, hp), jnp.float32).at[:, :hidden].set(
        jnp.transpose(w_self).astype(jnp.float32))
    wn_t = jnp.transpose(w_neigh).astype(jnp.float32)            # (fin, hidden)
    w_stack = jnp.zeros((w_cat, hp), jnp.float32)
    w_stack = w_stack.at[1:fin + 1, :hidden].set(wn_t)           # hi half
    w_stack = w_stack.at[fin + 1:2 * fin + 1, :hidden].set(wn_t)  # lo half
    bias_p = jnp.zeros((1, hp), jnp.float32).at[:, :hidden].set(
        bias.reshape(1, hidden).astype(jnp.float32))

    grid = (n_rows_p // tm, n_k_p // tk)   # (row tiles, K tiles) — K last

    # Rough double-buffered VMEM footprint; only raise the scoped limit when
    # it would not fit v5e's 16 MiB default (keeps v7x's 64 MiB budget safe).
    vmem_est = (2 * (tm * tk * 2 + tk * w_cat * 2 + tm * fin * 4 + tm * hp * 4)
                + tm * w_cat * 4
                + 2 * (fin * hp + w_cat * hp + hp) * 4)
    vmem_limit = None
    if vmem_est > 12 * 1024 * 1024:
        vmem_limit = min(2 * vmem_est, 64 * 1024 * 1024)

    out = pl.pallas_call(
        _sageconv_kernel,
        out_shape=jax.ShapeDtypeStruct((n_rows_p, hp), jnp.float32),
        grid_spec=pltpu.PrefetchScalarGridSpec(
            num_scalar_prefetch=0,
            grid=grid,
            in_specs=[
                pl.BlockSpec((tm, tk), lambda i, k: (i, k)),     # adj tile
                pl.BlockSpec((tk, w_cat), lambda i, k: (k, 0)),  # packed feats
                pl.BlockSpec((tm, fin), lambda i, k: (i, 0)),    # h row-tile
                pl.BlockSpec((fin, hp), lambda i, k: (0, 0)),    # W_self^T
                pl.BlockSpec((w_cat, hp), lambda i, k: (0, 0)),  # W_neigh stack
                pl.BlockSpec((1, hp), lambda i, k: (0, 0)),      # bias
            ],
            out_specs=pl.BlockSpec((tm, hp), lambda i, k: (i, 0)),
            scratch_shapes=[pltpu.VMEM((tm, w_cat), jnp.float32)],
        ),
        compiler_params=pltpu.CompilerParams(
            dimension_semantics=("parallel", "arbitrary"),
            vmem_limit_bytes=vmem_limit),
    )(adj_b, hcat, h_self, w_self_t, w_stack, bias_p)

    return out[:n, :hidden]


def graphsage_forward(adj, node_feature, dst_node_ids, params, *,
                      block_rows=None, block_k=None):
    """GraphSage.forward((snapshot, dst_node_ids)) equivalent.

    snapshot is represented by (adj, node_feature); returns (embeddings, ids).
    """
    h = node_feature.astype(jnp.float32)   # snapshot.node_feature().float()
    h = sageconv_mean(adj, h, params["w_self"], params["w_neigh"],
                      params["bias"], block_rows=block_rows, block_k=block_k)
    return h, dst_node_ids


if __name__ == "__main__":
    def reference(adj, feat, params):
        deg = jnp.clip(adj.sum(-1, keepdims=True), 1.0, None)
        h_neigh = (adj @ feat) / deg
        return feat @ params["w_self"].T + h_neigh @ params["w_neigh"].T + params["bias"]

    key = jax.random.PRNGKey(0)
    # (N, Fin, H, block_rows, block_k):
    #   case 1: small, auto tiles (2 row tiles x 1 K tile)
    #   case 2: odd sizes -> padding on both axes, H 40 -> 128 lane pad
    #   case 3: explicit decoupled tiles -> 2x2 grid with K accumulation
    cases = [
        (64, 32, 32, None, None),
        (200, 16, 40, None, None),
        (256, 32, 48, 128, 128),
    ]
    for (N, IN_FEAT, HIDDEN, bm, bk) in cases:
        key, k_adj, k_feat, k_ws, k_wn, k_b = jax.random.split(key, 6)

        # Random sparse-ish directed graph as dense adjacency (A[i, j]: edge j -> i).
        adj = (jax.random.uniform(k_adj, (N, N)) < 0.1).astype(jnp.float32)
        adj = adj * (1.0 - jnp.eye(N, dtype=jnp.float32))   # no self loops

        node_feature = jax.random.normal(k_feat, (N, IN_FEAT), dtype=jnp.float32)
        params = {
            "w_self": jax.random.normal(k_ws, (HIDDEN, IN_FEAT), dtype=jnp.float32) * 0.1,
            "w_neigh": jax.random.normal(k_wn, (HIDDEN, IN_FEAT), dtype=jnp.float32) * 0.1,
            "bias": jax.random.normal(k_b, (HIDDEN,), dtype=jnp.float32) * 0.01,
        }
        dst_node_ids = jnp.arange(min(16, N), dtype=jnp.int32)

        out, ids = graphsage_forward(adj, node_feature, dst_node_ids, params,
                                     block_rows=bm, block_k=bk)
        out = jax.block_until_ready(out)

        ref = reference(adj, node_feature, params)
        assert out.shape == (N, HIDDEN)
        err = float(jnp.max(jnp.abs(out - ref)))
        assert jnp.allclose(out, ref, atol=1e-4, rtol=1e-4), f"max abs err = {err}"
        assert ids.shape == dst_node_ids.shape

    print("KERNEL_OK")
</pallas_src>

<mosaic_0001>
module attributes {stable_mosaic.version = 11 : i64} {
  func.func @_sageconv_kernel(%arg0: i32, %arg1: i32, %arg2: memref<32x128xbf16, #tpu.memory_space<vmem>>, %arg3: memref<128x128xbf16, #tpu.memory_space<vmem>>, %arg4: memref<32x32xf32, #tpu.memory_space<vmem>>, %arg5: memref<32x128xf32, #tpu.memory_space<vmem>>, %arg6: memref<128x128xf32, #tpu.memory_space<vmem>>, %arg7: memref<1x128xf32, #tpu.memory_space<vmem>>, %arg8: memref<32x128xf32, #tpu.memory_space<vmem>>, %arg9: memref<32x128xf32, #tpu.memory_space<vmem>>) attributes {dimension_semantics = [#tpu.dimension_semantics<parallel>, #tpu.dimension_semantics<arbitrary>], iteration_bounds = array<i64: 2, 1>, scalar_prefetch = 0 : i64, scratch_operands = 1 : i64, tpu.core_type = #tpu.core_type<tc>, window_params = [{transform_indices = @transform_0, window_bounds = array<i64: 32, 128>}, {transform_indices = @transform_1, window_bounds = array<i64: 128, 128>}, {transform_indices = @transform_2, window_bounds = array<i64: 32, 32>}, {pipeline_mode = #tpu.pipeline_mode<synchronous>, transform_indices = @transform_3, window_bounds = array<i64: 32, 128>}, {pipeline_mode = #tpu.pipeline_mode<synchronous>, transform_indices = @transform_4, window_bounds = array<i64: 128, 128>}, {pipeline_mode = #tpu.pipeline_mode<synchronous>, transform_indices = @transform_5, window_bounds = array<i64: 1, 128>}, {transform_indices = @transform_6, window_bounds = array<i64: 32, 128>}]} {
    %c0_i32 = arith.constant 0 : i32
    %0 = arith.cmpi eq, %arg1, %c0_i32 : i32
    %1 = arith.extui %0 : i1 to i32
    %c0_i32_0 = arith.constant 0 : i32
    %2 = arith.cmpi ne, %1, %c0_i32_0 : i32
    scf.if %2 {
      %cst_10 = arith.constant 0.000000e+00 : f32
      %12 = vector.broadcast %cst_10 : f32 to vector<32x128xf32>
      %c0_11 = arith.constant 0 : index
      %c0_12 = arith.constant 0 : index
      %13 = vector.load %arg9[%c0_11, %c0_12] : memref<32x128xf32, #tpu.memory_space<vmem>>, vector<32x128xf32>
      tpu.vector_store %arg9[%c0_11, %c0_12], %12 {strides = array<i32>} : memref<32x128xf32, #tpu.memory_space<vmem>>, vector<32x128xf32>,
    } else {
    }
    %c0 = arith.constant 0 : index
    %c0_1 = arith.constant 0 : index
    %3 = vector.load %arg9[%c0, %c0_1] : memref<32x128xf32, #tpu.memory_space<vmem>>, vector<32x128xf32>
    %c0_2 = arith.constant 0 : index
    %c0_3 = arith.constant 0 : index
    %4 = vector.load %arg2[%c0_2, %c0_3] : memref<32x128xbf16, #tpu.memory_space<vmem>>, vector<32x128xbf16>
    %c0_4 = arith.constant 0 : index
    %c0_5 = arith.constant 0 : index
    %5 = vector.load %arg3[%c0_4, %c0_5] : memref<128x128xbf16, #tpu.memory_space<vmem>>, vector<128x128xbf16>
    %cst = arith.constant dense<0.000000e+00> : vector<32x128xf32>
    %6 = tpu.matmul %4, %5, %cst {dimension_numbers = #tpu.dot_dimension_numbers<[1], [0], [0], [1], [0, 0, 1, 1], [], []>} : vector<32x128xbf16>, vector<128x128xbf16>, vector<32x128xf32> -> vector<32x128xf32>
    %7 = arith.addf %3, %6 : vector<32x128xf32>
    %c0_6 = arith.constant 0 : index
    %c0_7 = arith.constant 0 : index
    %8 = vector.load %arg9[%c0_6, %c0_7] : memref<32x128xf32, #tpu.memory_space<vmem>>, vector<32x128xf32>
    tpu.vector_store %arg9[%c0_6, %c0_7], %7 {strides = array<i32>} : memref<32x128xf32, #tpu.memory_space<vmem>>, vector<32x128xf32>,
    %c0_i32_8 = arith.constant 0 : i32
    %9 = arith.cmpi eq, %arg1, %c0_i32_8 : i32
    %10 = arith.extui %9 : i1 to i32
    %c0_i32_9 = arith.constant 0 : i32
    %11 = arith.cmpi ne, %10, %c0_i32_9 : i32
    scf.if %11 {
      %c0_10 = arith.constant 0 : index
      %c0_11 = arith.constant 0 : index
      %12 = vector.load %arg9[%c0_10, %c0_11] : memref<32x128xf32, #tpu.memory_space<vmem>>, vector<32x128xf32>
      %13 = vector.extract_strided_slice %12 {offsets = [0, 0], sizes = [32, 1], strides = [1, 1]} : vector<32x128xf32> to vector<32x1xf32>
      %cst_12 = arith.constant 1.000000e+00 : f32
      %14 = vector.broadcast %cst_12 : f32 to vector<32x1xf32>
      %15 = arith.maximumf %13, %14 : vector<32x1xf32>
      %cst_13 = arith.constant 1.000000e+00 : f32
      %16 = vector.broadcast %cst_13 : f32 to vector<32x1xf32>
      %17 = arith.divf %16, %15 : vector<32x1xf32>
      %c0_14 = arith.constant 0 : index
      %c0_15 = arith.constant 0 : index
      %18 = vector.load %arg4[%c0_14, %c0_15] : memref<32x32xf32, #tpu.memory_space<vmem>>, vector<32x32xf32>
      %c0_16 = arith.constant 0 : index
      %c0_17 = arith.constant 0 : index
      %19 = vector.load %arg5[%c0_16, %c0_17] : memref<32x128xf32, #tpu.memory_space<vmem>>, vector<32x128xf32>
      %cst_18 = arith.constant dense<0.000000e+00> : vector<32x128xf32>
      %20 = tpu.matmul %18, %19, %cst_18 {dimension_numbers = #tpu.dot_dimension_numbers<[1], [0], [0], [1], [0, 0, 1, 1], [], []>} : vector<32x32xf32>, vector<32x128xf32>, vector<32x128xf32> -> vector<32x128xf32>
      %c0_19 = arith.constant 0 : index
      %c0_20 = arith.constant 0 : index
      %21 = vector.load %arg6[%c0_19, %c0_20] : memref<128x128xf32, #tpu.memory_space<vmem>>, vector<128x128xf32>
      %cst_21 = arith.constant dense<0.000000e+00> : vector<32x128xf32>
      %22 = tpu.matmul %12, %21, %cst_21 {dimension_numbers = #tpu.dot_dimension_numbers<[1], [0], [0], [1], [0, 0, 1, 1], [], []>} : vector<32x128xf32>, vector<128x128xf32>, vector<32x128xf32> -> vector<32x128xf32>
      %23 = vector.broadcast %17 : vector<32x1xf32> to vector<32x128xf32>
      %24 = arith.mulf %22, %23 : vector<32x128xf32>
      %25 = arith.addf %20, %24 : vector<32x128xf32>
      %c0_22 = arith.constant 0 : index
      %c0_23 = arith.constant 0 : index
      %26 = vector.load %arg7[%c0_22, %c0_23] : memref<1x128xf32, #tpu.memory_space<vmem>>, vector<1x128xf32>
      %27 = vector.broadcast %26 : vector<1x128xf32> to vector<32x128xf32>
      %28 = arith.addf %25, %27 : vector<32x128xf32>
      %c0_24 = arith.constant 0 : index
      %c0_25 = arith.constant 0 : index
      %29 = vector.load %arg8[%c0_24, %c0_25] : memref<32x128xf32, #tpu.memory_space<vmem>>, vector<32x128xf32>
      tpu.vector_store %arg8[%c0_24, %c0_25], %28 {strides = array<i32>} : memref<32x128xf32, #tpu.memory_space<vmem>>, vector<32x128xf32>,
    } else {
    }
    return
  }
  func.func @transform_0(%arg0: i32, %arg1: i32) -> (i32, i32) {
    %c0_i32 = arith.constant 0 : i32
    return %arg0, %arg1 : i32, i32
  }
  func.func @transform_1(%arg0: i32, %arg1: i32) -> (i32, i32) {
    %c0_i32 = arith.constant 0 : i32
    %c0_i32_0 = arith.constant 0 : i32
    return %arg1, %c0_i32 : i32, i32
  }
  func.func @transform_2(%arg0: i32, %arg1: i32) -> (i32, i32) {
    %c0_i32 = arith.constant 0 : i32
    %c0_i32_0 = arith.constant 0 : i32
    return %arg0, %c0_i32 : i32, i32
  }
  func.func @transform_3(%arg0: i32, %arg1: i32) -> (i32, i32) {
    %c0_i32 = arith.constant 0 : i32
    %c0_i32_0 = arith.constant 0 : i32
    %c0_i32_1 = arith.constant 0 : i32
    return %c0_i32, %c0_i32_0 : i32, i32
  }
  func.func @transform_4(%arg0: i32, %arg1: i32) -> (i32, i32) {
    %c0_i32 = arith.constant 0 : i32
    %c0_i32_0 = arith.constant 0 : i32
    %c0_i32_1 = arith.constant 0 : i32
    return %c0_i32, %c0_i32_0 : i32, i32
  }
  func.func @transform_5(%arg0: i32, %arg1: i32) -> (i32, i32) {
    %c0_i32 = arith.constant 0 : i32
    %c0_i32_0 = arith.constant 0 : i32
    %c0_i32_1 = arith.constant 0 : i32
    return %c0_i32, %c0_i32_0 : i32, i32
  }
  func.func @transform_6(%arg0: i32, %arg1: i32) -> (i32, i32) {
    %c0_i32 = arith.constant 0 : i32
    %c0_i32_0 = arith.constant 0 : i32
    return %arg0, %c0_i32 : i32, i32
  }
}

</mosaic_0001>

<llo_original>
// kernel: tpu_custom_call.1
$region0: #{tpu_custom_call.1}
  #allocation0 [shape = 'u32[]', space=smem, size = 0x4, offset = 0x4, fixed_abs, tag = 'smem constant byte address 0x4 - core index']
  #allocation1 [shape = 'u32[144,128]{1,0:T(1,128)}', space=vmem, size = 0x12000, scoped, tag = 'internal scratch']
  #allocation2 [shape = 'f32[32,128]{1,0:T(8,128)}', space=vmem, size = 0x4000, scoped, tag = 'scratch operand']
  %s0 = inlined_call_operand.vmem [shape: bf16[64,128], index: 0, kind: input, shape index: {}]
  %s1 = inlined_call_operand.vmem [shape: bf16[128,128], index: 1, kind: input, shape index: {}]
  %s2 = inlined_call_operand.vmem [shape: f32[64,32], index: 2, kind: input, shape index: {}]
  %s3 = inlined_call_operand.hbm [shape: f32[32,128], index: 3, kind: input, shape index: {}]
  %s4 = inlined_call_operand.hbm [shape: f32[128,128], index: 4, kind: input, shape index: {}]
  %s5 = inlined_call_operand.vmem [shape: f32[1,128], index: 5, kind: input, shape index: {}]
  %s6 = inlined_call_operand.hbm [shape: f32[64,128], index: 6, kind: output, shape index: {}]
  %s7 = sld [smem:[#allocation0]]
  $region73: #{tpu_custom_call.1} parent=0
    _
  %s9 = ssub.s32 1, %s7
  %s10 = scalar_select 0, %s9, %s7
  $region1: #{tpu_custom_call.1} parent=0
    #allocation3 [shape = 'u8[16384]{0}', space=vmem, size = 0x4000, scoped, tag = 'input window, operand 3, single buffered']
    #allocation4 [shape = 's32[2]{0}', space=sflag, size = 0x8, scoped, tag = 'scoped memory for tpu_custom_call.1']
    #allocation5 [shape = 's32[2]{0}', space=sflag, size = 0x8, scoped, tag = 'scoped memory for tpu_custom_call.1']
    #allocation6 [shape = 'u8[65536]{0}', space=vmem, size = 0x10000, scoped, tag = 'input window, operand 4, single buffered']
    #allocation7 [shape = 's32[1]{0}', space=sflag, size = 0x4, scoped, tag = 'scoped memory for tpu_custom_call.1']
    #allocation8 [shape = 'u8[32768]{0}', space=vmem, size = 0x8000, scoped, tag = 'output window, operand 0']
    %11 = vsyncpa [#allocation4], 0
    %12 = vsyncpa [#allocation7], 0
    %13 = vsyncpa [#allocation5], 0
    %s14 = scalar_lea.sflag [#allocation5], 1
    %15 = vsyncpa %s14, 0
    loop: start=0, step=1, limit=4
    $region2: #{tpu_custom_call.1} parent=1 // loop_pre_header
      _
    $region3: #{tpu_custom_call.1} parent=1 // loop_header
      %s17 = sphi 0, %s21
      %p18 = scmp.ge.s32.totalorder %s17, 4
      %s24 = sphi 0, %s36
      %s25 = sphi 0, %s32
      %s26 = sphi 0, %s24
      %s27 = sphi 0, %s25
      %s28 = sphi 0, %s26
      %s29 = sphi 0, %s27
      %s41 = sphi 0, %s43
      %s44 = sphi 0, %s41
      %s45 = sphi 0, %s44
      %s61 = sphi 0, %s45
      %s67 = sphi 0, %s69
      %s70 = sphi 0, %s67
      %s71 = sphi 0, %s70
      %s87 = sphi 0, %s71
      %s93 = sphi 0, %s95
      %s96 = sphi 0, %s93
      %s97 = sphi 0, %s96
      %s113 = sphi 0, %s97
      %s117 = sphi 0, %s117
      %s119 = sphi 0, %s117
      %s120 = sphi 0, %s119
      %s134 = sphi 0, %s120
      %s138 = sphi 0, %s138
      %s140 = sphi 0, %s138
      %s141 = sphi 0, %s140
      %s155 = sphi 0, %s141
      %s159 = sphi 0, %s159
      %s161 = sphi 0, %s159
      %s162 = sphi 0, %s161
      %s176 = sphi 0, %s162
      %s182 = sphi 0, %s184
      %s185 = sphi 0, %s182
      %s186 = sphi 0, %s185
      %s202 = sphi 0, %s186
    $region4: #{tpu_custom_call.1} parent=1 // loop_header_branch
      %20 = sbr.rel (%p18) target = $region8
    $region5: #{tpu_custom_call.1} parent=1 // loop_body
      %s22 = ssub.s32 %s17, 1
      %s23 = ssub.s32 %s17, 2
      %s30 = sadd.s32 1, %s25
      %p31 = scmp.ge.s32.totalorder %s30, 1
      %s32 = scalar_select %p31, 0, %s30
      %s33 = sadd.s32 1, %s24
      %s34 = scalar_select %p31, %s33, %s24
      %p35 = scmp.ge.s32.totalorder %s34, 2
      %s36 = scalar_select %p35, 0, %s34
      %s37 = ssub.s32 %s24, %s36
      %s38 = ssub.s32 %s25, %s32
      %s39 = sor.u32 %s37, %s38
      %p40 = scmp.eq.s32.totalorder %s39, 0
      %s42 = sadd.s32 %s41, 1
      %s43 = scalar_select %p40, %s41, %s42
      %p46 = pneg %p40
      %p47 = scmp.eq.s32.totalorder %s17, 1
      %p48 = por %p46, %p47
      %p49 = scmp.ne.s32.totalorder %s41, %s44
      %p50 = scmp.eq.s32.totalorder %s17, 0
      %p51 = por %p49, %p50
      %p52 = scmp.ne.s32.totalorder %s41, %s44
      %p53 = scmp.eq.s32.totalorder %s22, 1
      %p54 = por %p52, %p53
      %p55 = scmp.ne.s32.totalorder %s44, %s45
      %p56 = scmp.eq.s32.totalorder %s22, 0
      %p57 = por %p55, %p56
      %p58 = scmp.ne.s32.totalorder %s44, %s45
      %p59 = scmp.eq.s32.totalorder %s23, 1
      %p60 = por %p58, %p59
      %p62 = scmp.ne.s32.totalorder %s45, %s61
      %p63 = scmp.eq.s32.totalorder %s23, 0
      %p64 = por %p62, %p63
      %s65 = ssub.s32 %s25, %s32
      %p66 = scmp.eq.s32.totalorder %s65, 0
      %s68 = sadd.s32 %s67, 1
      %s69 = scalar_select %p66, %s67, %s68
      %p72 = pneg %p66
      %p73 = scmp.eq.s32.totalorder %s17, 1
      %p74 = por %p72, %p73
      %p75 = scmp.ne.s32.totalorder %s67, %s70
      %p76 = scmp.eq.s32.totalorder %s17, 0
      %p77 = por %p75, %p76
      %p78 = scmp.ne.s32.totalorder %s67, %s70
      %p79 = scmp.eq.s32.totalorder %s22, 1
      %p80 = por %p78, %p79
      %p81 = scmp.ne.s32.totalorder %s70, %s71
      %p82 = scmp.eq.s32.totalorder %s22, 0
      %p83 = por %p81, %p82
      %p84 = scmp.ne.s32.totalorder %s70, %s71
      %p85 = scmp.eq.s32.totalorder %s23, 1
      %p86 = por %p84, %p85
      %p88 = scmp.ne.s32.totalorder %s71, %s87
      %p89 = scmp.eq.s32.totalorder %s23, 0
      %p90 = por %p88, %p89
      %s91 = ssub.s32 %s24, %s36
      %p92 = scmp.eq.s32.totalorder %s91, 0
      %s94 = sadd.s32 %s93, 1
      %s95 = scalar_select %p92, %s93, %s94
      %p98 = pneg %p92
      %p99 = scmp.eq.s32.totalorder %s17, 1
      %p100 = por %p98, %p99
      %p101 = scmp.ne.s32.totalorder %s93, %s96
      %p102 = scmp.eq.s32.totalorder %s17, 0
      %p103 = por %p101, %p102
      %p104 = scmp.ne.s32.totalorder %s93, %s96
      %p105 = scmp.eq.s32.totalorder %s22, 1
      %p106 = por %p104, %p105
      %p107 = scmp.ne.s32.totalorder %s96, %s97
      %p108 = scmp.eq.s32.totalorder %s22, 0
      %p109 = por %p107, %p108
      %p110 = scmp.ne.s32.totalorder %s96, %s97
      %p111 = scmp.eq.s32.totalorder %s23, 1
      %p112 = por %p110, %p111
      %p114 = scmp.ne.s32.totalorder %s97, %s113
      %p115 = scmp.eq.s32.totalorder %s23, 0
      %p116 = por %p114, %p115
      %s118 = sadd.s32 %s117, 1
      %p121 = scmp.eq.s32.totalorder %s17, 1
      %p122 = scmp.ne.s32.totalorder %s117, %s119
      %p123 = scmp.eq.s32.totalorder %s17, 0
      %p124 = por %p122, %p123
      %p125 = scmp.ne.s32.totalorder %s117, %s119
      %p126 = scmp.eq.s32.totalorder %s22, 1
      %p127 = por %p125, %p126
      %p128 = scmp.ne.s32.totalorder %s119, %s120
      %p129 = scmp.eq.s32.totalorder %s22, 0
      %p130 = por %p128, %p129
      %p131 = scmp.ne.s32.totalorder %s119, %s120
      %p132 = scmp.eq.s32.totalorder %s23, 1
      %p133 = por %p131, %p132
      %p135 = scmp.ne.s32.totalorder %s120, %s134
      %p136 = scmp.eq.s32.totalorder %s23, 0
      %p137 = por %p135, %p136
      %s139 = sadd.s32 %s138, 1
      %p142 = scmp.eq.s32.totalorder %s17, 1
      %p143 = scmp.ne.s32.totalorder %s138, %s140
      %p144 = scmp.eq.s32.totalorder %s17, 0
      %p145 = por %p143, %p144
      %p146 = scmp.ne.s32.totalorder %s138, %s140
      %p147 = scmp.eq.s32.totalorder %s22, 1
      %p148 = por %p146, %p147
      %p149 = scmp.ne.s32.totalorder %s140, %s141
      %p150 = scmp.eq.s32.totalorder %s22, 0
      %p151 = por %p149, %p150
      %p152 = scmp.ne.s32.totalorder %s140, %s141
      %p153 = scmp.eq.s32.totalorder %s23, 1
      %p154 = por %p152, %p153
      %p156 = scmp.ne.s32.totalorder %s141, %s155
      %p157 = scmp.eq.s32.totalorder %s23, 0
      %p158 = por %p156, %p157
      %s160 = sadd.s32 %s159, 1
      %p163 = scmp.eq.s32.totalorder %s17, 1
      %p164 = scmp.ne.s32.totalorder %s159, %s161
      %p165 = scmp.eq.s32.totalorder %s17, 0
      %p166 = por %p164, %p165
      %p167 = scmp.ne.s32.totalorder %s159, %s161
      %p168 = scmp.eq.s32.totalorder %s22, 1
      %p169 = por %p167, %p168
      %p170 = scmp.ne.s32.totalorder %s161, %s162
      %p171 = scmp.eq.s32.totalorder %s22, 0
      %p172 = por %p170, %p171
      %p173 = scmp.ne.s32.totalorder %s161, %s162
      %p174 = scmp.eq.s32.totalorder %s23, 1
      %p175 = por %p173, %p174
      %p177 = scmp.ne.s32.totalorder %s162, %s176
      %p178 = scmp.eq.s32.totalorder %s23, 0
      %p179 = por %p177, %p178
      %s180 = ssub.s32 %s24, %s36
      %p181 = scmp.eq.s32.totalorder %s180, 0
      %s183 = sadd.s32 %s182, 1
      %s184 = scalar_select %p181, %s182, %s183
      %p187 = pneg %p181
      %p188 = scmp.eq.s32.totalorder %s17, 1
      %p189 = por %p187, %p188
      %p190 = scmp.ne.s32.totalorder %s182, %s185
      %p191 = scmp.eq.s32.totalorder %s17, 0
      %p192 = por %p190, %p191
      %p193 = scmp.ne.s32.totalorder %s182, %s185
      %p194 = scmp.eq.s32.totalorder %s22, 1
      %p195 = por %p193, %p194
      %p196 = scmp.ne.s32.totalorder %s185, %s186
      %p197 = scmp.eq.s32.totalorder %s22, 0
      %p198 = por %p196, %p197
      %p199 = scmp.ne.s32.totalorder %s185, %s186
      %p200 = scmp.eq.s32.totalorder %s23, 1
      %p201 = por %p199, %p200
      %p203 = scmp.ne.s32.totalorder %s186, %s202
      %p204 = scmp.eq.s32.totalorder %s23, 0
      %p205 = por %p203, %p204
      %p206 = scmp.le.s32.totalorder 1, %s17
      %p207 = scmp.lt.s32.totalorder %s17, 3
      %p208 = pnand %p206, %p207
      %p209 = pneg %p208
      // Predicated region
      $region9: #{tpu_custom_call.1} parent=5 // pred_check
        _
      $region10: #{tpu_custom_call.1} parent=5 // pred_check_branch
        %211 = sbr.rel (%p208) target = $region12
      $region11: #{tpu_custom_call.1} parent=5 // pred_region
        %s212 = ssub.s32 %s17, 1
        // Predicated region
        $region13: #{tpu_custom_call.1} parent=11 // pred_check
          %p213 = pneg %p83
        $region14: #{tpu_custom_call.1} parent=11 // pred_check_branch
          %215 = sbr.rel (%p213) target = $region16
        $region15: #{tpu_custom_call.1} parent=11 // pred_region
          %s216 = smul.u32 16, %s27
          %p217 = scmp.lt.s32.totalorder %s216, 15
          %s218 = scalar_select %p217, %s216, 15
          %s219 = smul.addr %s218, 4
          %s220 = scalar_lea.vmem %s1, %s219
          %s221 = smul.u32 16, %s27
        $region16: #{tpu_custom_call.1} parent=11 // pred_fallthru
          _
        // Predicated region
        $region17: #{tpu_custom_call.1} parent=11 // pred_check
          %p222 = pneg %p130
        $region18: #{tpu_custom_call.1} parent=11 // pred_check_branch
          %224 = sbr.rel (%p222) target = $region20
        $region19: #{tpu_custom_call.1} parent=11 // pred_region
          %s226 = ssub.s32 512, 512
          %227 = vsyncadd [#allocation4], %s226
          %s228 = sshll.u32 [#allocation3], 4
          %s229 = int_to_ptr.vmem [resolvable:$true] %s228
          %234 = dma.hbm_to_vmem [thread:$0]  %s3, 512, %s229, [#allocation4], 128, 128, 8
        $region20: #{tpu_custom_call.1} parent=11 // pred_fallthru
          _
        // Predicated region
        $region21: #{tpu_custom_call.1} parent=11 // pred_check
          %p235 = pneg %p151
        $region22: #{tpu_custom_call.1} parent=11 // pred_check_branch
          %237 = sbr.rel (%p235) target = $region24
        $region23: #{tpu_custom_call.1} parent=11 // pred_region
          %s239 = ssub.s32 2048, 2048
          %240 = vsyncadd [#allocation7], %s239
          %s241 = sshll.u32 [#allocation6], 4
          %s242 = int_to_ptr.vmem [resolvable:$true] %s241
          %247 = dma.hbm_to_vmem [thread:$0]  %s4, 2048, %s242, [#allocation7], 128, 128, 8
        $region24: #{tpu_custom_call.1} parent=11 // pred_fallthru
          _
        // Predicated region
        $region25: #{tpu_custom_call.1} parent=11 // pred_check
          %p248 = pneg %p172
        $region26: #{tpu_custom_call.1} parent=11 // pred_check_branch
          %250 = sbr.rel (%p248) target = $region28
        $region27: #{tpu_custom_call.1} parent=11 // pred_region
          _
        $region28: #{tpu_custom_call.1} parent=11 // pred_fallthru
          _
      $region12: #{tpu_custom_call.1} parent=5 // pred_fallthru
        _
      %p251 = scmp.lt.s32.totalorder %s17, 2
      // Predicated region
      $region29: #{tpu_custom_call.1} parent=5 // pred_check
        %p252 = pneg %p251
      $region30: #{tpu_custom_call.1} parent=5 // pred_check_branch
        %254 = sbr.rel (%p252) target = $region32
      $region31: #{tpu_custom_call.1} parent=5 // pred_region
        // Predicated region
        $region33: #{tpu_custom_call.1} parent=31 // pred_check
          %p255 = pneg %p51
        $region34: #{tpu_custom_call.1} parent=31 // pred_check_branch
          %257 = sbr.rel (%p255) target = $region36
        $region35: #{tpu_custom_call.1} parent=31 // pred_region
          %s258 = smul.u32 4, %s24
          %p259 = scmp.lt.s32.totalorder %s258, 7
          %s260 = scalar_select %p259, %s258, 7
          %p261 = scmp.lt.s32.totalorder %s25, 0
          %s262 = scalar_select %p261, %s25, 0
          %s263 = sadd.s32 %s262, %s260
          %s264 = smul.addr %s263, 4
          %s265 = scalar_lea.vmem %s0, %s264
          %s266 = smul.u32 4, %s24
        $region36: #{tpu_custom_call.1} parent=31 // pred_fallthru
          _
        // Predicated region
        $region37: #{tpu_custom_call.1} parent=31 // pred_check
          %p267 = pneg %p103
        $region38: #{tpu_custom_call.1} parent=31 // pred_check_branch
          %269 = sbr.rel (%p267) target = $region40
        $region39: #{tpu_custom_call.1} parent=31 // pred_region
          %s270 = smul.u32 4, %s24
          %p271 = scmp.lt.s32.totalorder %s270, 7
          %s272 = scalar_select %p271, %s270, 7
          %s273 = smul.addr %s272, 8
          %s274 = scalar_lea.vmem %s2, %s273
          %s275 = smul.u32 4, %s24
        $region40: #{tpu_custom_call.1} parent=31 // pred_fallthru
          _
      $region32: #{tpu_custom_call.1} parent=5 // pred_fallthru
        _
      %p276 = scmp.le.s32.totalorder 1, %s17
      %p277 = scmp.lt.s32.totalorder %s17, 3
      %p278 = pnand %p276, %p277
      %p279 = pneg %p278
      // Predicated region
      $region41: #{tpu_custom_call.1} parent=5 // pred_check
        _
      $region42: #{tpu_custom_call.1} parent=5 // pred_check_branch
        %281 = sbr.rel (%p278) target = $region44
      $region43: #{tpu_custom_call.1} parent=5 // pred_region
        %s282 = ssub.s32 %s17, 1
        // Predicated region
        $region45: #{tpu_custom_call.1} parent=43 // pred_check
          %p283 = pneg %p130
        $region46: #{tpu_custom_call.1} parent=43 // pred_check_branch
          %285 = sbr.rel (%p283) target = $region48
        $region47: #{tpu_custom_call.1} parent=43 // pred_region
          %286 = dma.done [#allocation4], 512
        $region48: #{tpu_custom_call.1} parent=43 // pred_fallthru
          _
        // Predicated region
        $region49: #{tpu_custom_call.1} parent=43 // pred_check
          %p287 = pneg %p151
        $region50: #{tpu_custom_call.1} parent=43 // pred_check_branch
          %289 = sbr.rel (%p287) target = $region52
        $region51: #{tpu_custom_call.1} parent=43 // pred_region
          %290 = dma.done [#allocation7], 2048
        $region52: #{tpu_custom_call.1} parent=43 // pred_fallthru
          _
        %s291 = smul.u32 4, %s26
        %p292 = scmp.lt.s32.totalorder %s291, 7
        %s293 = scalar_select %p292, %s291, 7
        %p294 = scmp.lt.s32.totalorder %s27, 0
        %s295 = scalar_select %p294, %s27, 0
        %s296 = sadd.s32 %s295, %s293
        %s297 = smul.addr %s296, 4
        %s298 = scalar_lea.vmem %s0, %s297
        %p299 = pneg %p57
        %p300 = pneg %p54
        %s301 = smul.u32 16, %s27
        %p302 = scmp.lt.s32.totalorder %s301, 15
        %s303 = scalar_select %p302, %s301, 15
        %s304 = smul.addr %s303, 4
        %s305 = scalar_lea.vmem %s1, %s304
        %p306 = pneg %p83
        %p307 = pneg %p80
        %s308 = smul.u32 4, %s26
        %p309 = scmp.lt.s32.totalorder %s308, 7
        %s310 = scalar_select %p309, %s308, 7
        %s311 = smul.addr %s310, 8
        %s312 = scalar_lea.vmem %s2, %s311
        %p313 = pneg %p109
        %p314 = pneg %p106
        %p315 = pneg %p130
        %p316 = pneg %p127
        %p317 = pneg %p151
        %p318 = pneg %p148
        %p319 = pneg %p172
        %p320 = pneg %p169
        %p321 = pneg %p198
        %p322 = pneg %p195
        %s323 = sand.u32 %s185, 1
        %s324 = scalar_lea.sflag [#allocation5], %s323
        %s325 = sand.u32 %s185, 1
        %s326 = smul.addr %s325, 32
        %s327 = scalar_lea.vmem [#allocation8], %s326
        %s328 = smul.u32 4, %s26
        %p329 = scmp.lt.s32.totalorder %s328, 7
        %s330 = scalar_select %p329, %s328, 7
        %p331 = scmp.lt.s32.totalorder %s27, 0
        %s332 = scalar_select %p331, %s27, 0
        %s333 = sadd.s32 %s332, %s330
        %s334 = smul.addr %s333, 4
        %s335 = scalar_lea.vmem %s0, %s334
        %s336 = smul.u32 4, %s26
        %s337 = smul.u32 16, %s27
        %p338 = scmp.lt.s32.totalorder %s337, 15
        %s339 = scalar_select %p338, %s337, 15
        %s340 = smul.addr %s339, 4
        %s341 = scalar_lea.vmem %s1, %s340
        %s342 = smul.u32 16, %s27
        %s343 = smul.u32 4, %s26
        %p344 = scmp.lt.s32.totalorder %s343, 7
        %s345 = scalar_select %p344, %s343, 7
        %s346 = smul.addr %s345, 8
        %s347 = scalar_lea.vmem %s2, %s346
        %s348 = smul.u32 4, %s26
        %s349 = smul.u32 4, %s26
        %p351 = scmp.eq.s32.totalorder %s27, 0
        // Predicated region
        $region53: #{tpu_custom_call.1} parent=43 // pred_check
          %p352 = pneg %p351
        $region54: #{tpu_custom_call.1} parent=43 // pred_check_branch
          %354 = sbr.rel (%p352) target = $region56
        $region55: #{tpu_custom_call.1} parent=43 // pred_region
          %355 = vst [vmem:[#allocation2] sm:$0xff] 0.0
          %356 = vst [vmem:[#allocation2 + $0x8] sm:$0xff] 0.0
          %357 = vst [vmem:[#allocation2 + $0x10] sm:$0xff] 0.0
          %358 = vst [vmem:[#allocation2 + $0x18] sm:$0xff] 0.0
        $region56: #{tpu_custom_call.1} parent=43 // pred_fallthru
          _
        %v359 = vld [vmem:[#allocation2] sm:$0xff]
        %v360 = vld [vmem:[#allocation2 + $0x8] sm:$0xff]
        %v361 = vld [vmem:[#allocation2 + $0x10] sm:$0xff]
        %v362 = vld [vmem:[#allocation2 + $0x18] sm:$0xff]
        %v363 = vld [vmem:[%s335] sm:$0xf]
        %v364 = vld [vmem:[%s335 + $0x4] sm:$0xf]
        %v365 = vld [vmem:[%s335 + $0x8] sm:$0xf]
        %v366 = vld [vmem:[%s335 + $0xc] sm:$0xf]
        %v367 = vld [vmem:[%s341] sm:$0xf]
        %v368 = vld [vmem:[%s341 + $0x4] sm:$0xf]
        %v369 = vld [vmem:[%s341 + $0x8] sm:$0xf]
        %v370 = vld [vmem:[%s341 + $0xc] sm:$0xf]
        %v371 = vld [vmem:[%s341 + $0x10] sm:$0xf]
        %v372 = vld [vmem:[%s341 + $0x14] sm:$0xf]
        %v373 = vld [vmem:[%s341 + $0x18] sm:$0xf]
        %v374 = vld [vmem:[%s341 + $0x1c] sm:$0xf]
        %v375 = vld [vmem:[%s341 + $0x20] sm:$0xf]
        %v376 = vld [vmem:[%s341 + $0x24] sm:$0xf]
        %v377 = vld [vmem:[%s341 + $0x28] sm:$0xf]
        %v378 = vld [vmem:[%s341 + $0x2c] sm:$0xf]
        %v379 = vld [vmem:[%s341 + $0x30] sm:$0xf]
        %v380 = vld [vmem:[%s341 + $0x34] sm:$0xf]
        %v381 = vld [vmem:[%s341 + $0x38] sm:$0xf]
        %v382 = vld [vmem:[%s341 + $0x3c] sm:$0xf]
        %v387 = vunpack.c.l.b16 %v363
        %v388 = vunpack.c.l.b16 %v364
        %v389 = vunpack.c.l.b16 %v365
        %v390 = vunpack.c.l.b16 %v366
        %v391 = vpack.c.b16 %v388, %v387
        %v392 = vpack.c.b16 %v390, %v389
        %v411 = vunpack.c.l.b16 %v367
        %v412 = vunpack.c.l.b16 %v368
        %v413 = vunpack.c.l.b16 %v369
        %v414 = vunpack.c.l.b16 %v370
        %v415 = vunpack.c.l.b16 %v371
        %v416 = vunpack.c.l.b16 %v372
        %v417 = vunpack.c.l.b16 %v373
        %v418 = vunpack.c.l.b16 %v374
        %v419 = vunpack.c.l.b16 %v375
        %v420 = vunpack.c.l.b16 %v376
        %v421 = vunpack.c.l.b16 %v377
        %v422 = vunpack.c.l.b16 %v378
        %v423 = vunpack.c.l.b16 %v379
        %v424 = vunpack.c.l.b16 %v380
        %v425 = vunpack.c.l.b16 %v381
        %v426 = vunpack.c.l.b16 %v382
        %v427 = vpack.c.b16 %v412, %v411
        %v428 = vpack.c.b16 %v414, %v413
        %v429 = vpack.c.b16 %v416, %v415
        %v430 = vpack.c.b16 %v418, %v417
        %v431 = vpack.c.b16 %v420, %v419
        %v432 = vpack.c.b16 %v422, %v421
        %v433 = vpack.c.b16 %v424, %v423
        %v434 = vpack.c.b16 %v426, %v425
        %443 = vmatprep.subr.bf16.mxu0 0
        %444 = vmatpush1.bf16.msra.mxu0 %v427
        %445 = vmatprep.subr.bf16.mxu0 0
        %446 = vmatpush1.bf16.msra.mxu0 %v428
        %447 = vmatprep.subr.bf16.mxu0 0
        %448 = vmatpush1.bf16.msra.mxu0 %v429
        %449 = vmatprep.subr.bf16.mxu0 0
        %450 = vmatpush1.bf16.msra.mxu0 %v430
        %451 = vmatprep.subr.bf16.mxu0 0
        %452 = vmatpush1.bf16.msra.mxu0 %v431
        %453 = vmatprep.subr.bf16.mxu0 0
        %454 = vmatpush1.bf16.msra.mxu0 %v432
        %455 = vmatprep.subr.bf16.mxu0 0
        %456 = vmatpush1.bf16.msra.mxu0 %v433
        %457 = vmatprep.subr.bf16.mxu0 0
        %458 = vmatpush1.bf16.msra.mxu0 %v434
        %459 = vmatprep.subr.bf16.mxu0 0
        %460 = vmatpush1.bf16.msra.mxu0 0
        %461 = vmatprep.subr.bf16.mxu0 0
        %462 = vmatpush1.bf16.msra.mxu0 0
        %463 = vmatprep.subr.bf16.mxu0 0
        %464 = vmatpush1.bf16.msra.mxu0 0
        %465 = vmatprep.subr.bf16.mxu0 0
        %466 = vmatpush1.bf16.msra.mxu0 0
        %467 = vmatprep.subr.bf16.mxu0 0
        %468 = vmatpush1.bf16.msra.mxu0 0
        %469 = vmatprep.subr.bf16.mxu0 0
        %470 = vmatpush1.bf16.msra.mxu0 0
        %471 = vmatprep.subr.bf16.mxu0 0
        %472 = vmatpush1.bf16.msra.mxu0 0
        %473 = vmatprep.subr.bf16.mxu0 0
        %474 = vmatpush1.bf16.msra.mxu0 0
        %475 = vmatprep.mubr.bf16.mxu0 0
        %476 = vmatmul.mubr.bf16.gmra.mrb[0].mxu0 %v391
        %v477 = vpop.f32.mrb[0].mxu0
        %v478 = vadd.f32 0.0, %v477
        %v479 = vpop.f32.mrb[0].mxu0
        %v480 = vpop.f32.mrb[0].mxu0
        %v481 = vadd.f32 0.0, %v480
        %v482 = vpop.f32.mrb[0].mxu0
        %483 = vmatprep.mubr.bf16.mxu0 0
        %484 = vmatmul.mubr.bf16.gmra.mrb[0].mxu0 %v392
        %v485 = vpop.f32.mrb[0].mxu0
        %v486 = vadd.f32 0.0, %v485
        %v487 = vpop.f32.mrb[0].mxu0
        %v488 = vpop.f32.mrb[0].mxu0
        %v489 = vadd.f32 0.0, %v488
        %v490 = vpop.f32.mrb[0].mxu0
        %491 = vdwg.mxu0
        %v492 = vadd.f32 %v359, %v478
        %v493 = vadd.f32 %v360, %v481
        %v494 = vadd.f32 %v361, %v486
        %v495 = vadd.f32 %v362, %v489
        %496 = vst [vmem:[#allocation2] sm:$0xff] %v492
        %497 = vst [vmem:[#allocation2 + $0x8] sm:$0xff] %v493
        %498 = vst [vmem:[#allocation2 + $0x10] sm:$0xff] %v494
        %499 = vst [vmem:[#allocation2 + $0x18] sm:$0xff] %v495
        // Predicated region
        $region57: #{tpu_custom_call.1} parent=43 // pred_check
          %p500 = pneg %p351
        $region58: #{tpu_custom_call.1} parent=43 // pred_check_branch
          %502 = sbr.rel (%p500) target = $region60
        $region59: #{tpu_custom_call.1} parent=43 // pred_region
          %v503 = vld [vmem:[#allocation2] sm:$0xff]
          %v504 = vld [vmem:[#allocation2 + $0x8] sm:$0xff]
          %v505 = vld [vmem:[#allocation2 + $0x10] sm:$0xff]
          %v506 = vld [vmem:[#allocation2 + $0x18] sm:$0xff]
          %v507 = vmax.f32 %v503, 1.0
          %v508 = vmax.f32 %v504, 1.0
          %v509 = vmax.f32 %v505, 1.0
          %v510 = vmax.f32 %v506, 1.0
          %v511 = vrcp.pop %v507
          %v512 = vmul.f32 1.0, %v511
          %v513 = vrcp.pop %v508
          %v514 = vmul.f32 1.0, %v513
          %v515 = vrcp.pop %v509
          %v516 = vmul.f32 1.0, %v515
          %v517 = vrcp.pop %v510
          %v518 = vmul.f32 1.0, %v517
          %v519 = vld [vmem:[%s347] sm:$0xff]
          %v520 = vld [vmem:[%s347 + $0x8] sm:$0xff]
          %v521 = vld [vmem:[%s347 + $0x10] sm:$0xff]
          %v522 = vld [vmem:[%s347 + $0x18] sm:$0xff]
          %v523 = vld [vmem:[#allocation3] sm:$0xff]
          %v524 = vld [vmem:[#allocation3 + $0x8] sm:$0xff]
          %v525 = vld [vmem:[#allocation3 + $0x10] sm:$0xff]
          %v526 = vld [vmem:[#allocation3 + $0x18] sm:$0xff]
          %v527 = vld [vmem:[#allocation6] sm:$0xff]
          %v528 = vld [vmem:[#allocation6 + $0x8] sm:$0xff]
          %v529 = vld [vmem:[#allocation6 + $0x10] sm:$0xff]
          %v530 = vld [vmem:[#allocation6 + $0x18] sm:$0xff]
          %v531 = vld [vmem:[#allocation6 + $0x20] sm:$0xff]
          %v532 = vld [vmem:[#allocation6 + $0x28] sm:$0xff]
          %v533 = vld [vmem:[#allocation6 + $0x30] sm:$0xff]
          %v534 = vld [vmem:[#allocation6 + $0x38] sm:$0xff]
          %v535 = vld [vmem:[#allocation6 + $0x40] sm:$0xff]
          %v536 = vld [vmem:[#allocation6 + $0x48] sm:$0xff]
          %v537 = vld [vmem:[#allocation6 + $0x50] sm:$0xff]
          %v538 = vld [vmem:[#allocation6 + $0x58] sm:$0xff]
          %v539 = vld [vmem:[#allocation6 + $0x60] sm:$0xff]
          %v540 = vld [vmem:[#allocation6 + $0x68] sm:$0xff]
          %v541 = vld [vmem:[#allocation6 + $0x70] sm:$0xff]
          %v542 = vld [vmem:[#allocation6 + $0x78] sm:$0xff]
          %543 = vmatprep.subr.mxu0 0.0
          %544 = vmatpush1.msra.mxu0 %v527
          %545 = vmatprep.subr.mxu0 0.0
          %546 = vmatpush1.msra.mxu0 %v528
          %547 = vmatprep.subr.mxu0 0.0
          %548 = vmatpush1.msra.mxu0 %v529
          %549 = vmatprep.subr.mxu0 0.0
          %550 = vmatpush1.msra.mxu0 %v530
          %551 = vmatprep.subr.mxu0 0.0
          %552 = vmatpush1.msra.mxu0 %v531
          %553 = vmatprep.subr.mxu0 0.0
          %554 = vmatpush1.msra.mxu0 %v532
          %555 = vmatprep.subr.mxu0 0.0
          %556 = vmatpush1.msra.mxu0 %v533
          %557 = vmatprep.subr.mxu0 0.0
          %558 = vmatpush1.msra.mxu0 %v534
          %559 = vmatprep.subr.mxu0 0.0
          %560 = vmatpush1.msra.mxu0 %v535
          %561 = vmatprep.subr.mxu0 0.0
          %562 = vmatpush1.msra.mxu0 %v536
          %563 = vmatprep.subr.mxu0 0.0
          %564 = vmatpush1.msra.mxu0 %v537
          %565 = vmatprep.subr.mxu0 0.0
          %566 = vmatpush1.msra.mxu0 %v538
          %567 = vmatprep.subr.mxu0 0.0
          %568 = vmatpush1.msra.mxu0 %v539
          %569 = vmatprep.subr.mxu0 0.0
          %570 = vmatpush1.msra.mxu0 %v540
          %571 = vmatprep.subr.mxu0 0.0
          %572 = vmatpush1.msra.mxu0 %v541
          %573 = vmatprep.subr.mxu0 0.0
          %574 = vmatpush1.msra.mxu0 %v542
          %575 = vmatprep.subr.mxu0 0.0
          %576 = vmatpush1.msra.mxu0 0.0
          %577 = vmatprep.subr.mxu0 0.0
          %578 = vmatpush1.msra.mxu0 0.0
          %579 = vmatprep.subr.mxu0 0.0
          %580 = vmatpush1.msra.mxu0 0.0
          %581 = vmatprep.subr.mxu0 0.0
          %582 = vmatpush1.msra.mxu0 0.0
          %583 = vmatprep.subr.mxu0 0.0
          %584 = vmatpush1.msra.mxu0 0.0
          %585 = vmatprep.subr.mxu0 0.0
          %586 = vmatpush1.msra.mxu0 0.0
          %587 = vmatprep.subr.mxu0 0.0
          %588 = vmatpush1.msra.mxu0 0.0
          %589 = vmatprep.subr.mxu0 0.0
          %590 = vmatpush1.msra.mxu0 0.0
          %591 = vmatprep.subr.mxu0 0.0
          %592 = vmatpush1.msra.mxu0 0.0
          %593 = vmatprep.subr.mxu0 0.0
          %594 = vmatpush1.msra.mxu0 0.0
          %595 = vmatprep.subr.mxu0 0.0
          %596 = vmatpush1.msra.mxu0 0.0
          %597 = vmatprep.subr.mxu0 0.0
          %598 = vmatpush1.msra.mxu0 0.0
          %599 = vmatprep.subr.mxu0 0.0
          %600 = vmatpush1.msra.mxu0 0.0
          %601 = vmatprep.subr.mxu0 0.0
          %602 = vmatpush1.msra.mxu0 0.0
          %603 = vmatprep.subr.mxu0 0.0
          %604 = vmatpush1.msra.mxu0 0.0
          %605 = vmatprep.subr.mxu0 0.0
          %606 = vmatpush1.msra.mxu0 0.0
          %607 = vmatprep.mubr.f32.mxu0 0.0
          %608 = vmatmul.mubr.f32.gmra.mrb[0].mxu0 %v503
          %v609 = vpop.f32.mrb[0].mxu0
          %v610 = vadd.f32 0.0, %v609
          %v611 = vpop.f32.mrb[0].mxu0
          %612 = vmatprep.mubr.f32.mxu0 0.0
          %613 = vmatmul.mubr.f32.gmra.mrb[0].mxu0 %v504
          %v614 = vpop.f32.mrb[0].mxu0
          %v615 = vadd.f32 0.0, %v614
          %v616 = vpop.f32.mrb[0].mxu0
          %617 = vmatprep.mubr.f32.mxu0 0.0
          %618 = vmatmul.mubr.f32.gmra.mrb[0].mxu0 %v505
          %v619 = vpop.f32.mrb[0].mxu0
          %v620 = vadd.f32 0.0, %v619
          %v621 = vpop.f32.mrb[0].mxu0
          %622 = vmatprep.mubr.f32.mxu0 0.0
          %623 = vmatmul.mubr.f32.gmra.mrb[0].mxu0 %v506
          %v624 = vpop.f32.mrb[0].mxu0
          %v625 = vadd.f32 0.0, %v624
          %v626 = vpop.f32.mrb[0].mxu0
          %627 = vdwg.mxu0
          %629 = vset.pattern.permute.xlu0 0
          %630 = vperm.xlu0 %629, %v512
          %v631 = vpop.permute.xlu0 %630
          %634 = vset.pattern.permute.xlu0 0
          %635 = vperm.xlu0 %634, %v514
          %v636 = vpop.permute.xlu0 %635
          %639 = vset.pattern.permute.xlu0 0
          %640 = vperm.xlu0 %639, %v516
          %v641 = vpop.permute.xlu0 %640
          %644 = vset.pattern.permute.xlu0 0
          %645 = vperm.xlu0 %644, %v518
          %v646 = vpop.permute.xlu0 %645
          %v648 = vmul.f32 %v610, %v631
          %v649 = vmul.f32 %v615, %v636
          %v650 = vmul.f32 %v620, %v641
          %v651 = vmul.f32 %v625, %v646
          %vm652 = vcmask 261120
          %v654 = vsel %vm652, %v519, 0
          %v657 = vsel %vm652, %v520, 0
          %v660 = vsel %vm652, %v521, 0
          %v663 = vsel %vm652, %v522, 0
          %665 = vmatprep.subr.mxu0 0.0
          %666 = vmatpush1.msra.mxu0 %v523
          %667 = vmatprep.subr.mxu0 0.0
          %668 = vmatpush1.msra.mxu0 %v524
          %669 = vmatprep.subr.mxu0 0.0
          %670 = vmatpush1.msra.mxu0 %v525
          %671 = vmatprep.subr.mxu0 0.0
          %672 = vmatpush1.msra.mxu0 %v526
          %673 = vmatprep.subr.mxu0 0.0
          %674 = vmatpush1.msra.mxu0 0.0
          %675 = vmatprep.subr.mxu0 0.0
          %676 = vmatpush1.msra.mxu0 0.0
          %677 = vmatprep.subr.mxu0 0.0
          %678 = vmatpush1.msra.mxu0 0.0
          %679 = vmatprep.subr.mxu0 0.0
          %680 = vmatpush1.msra.mxu0 0.0
          %681 = vmatprep.subr.mxu0 0.0
          %682 = vmatpush1.msra.mxu0 0.0
          %683 = vmatprep.subr.mxu0 0.0
          %684 = vmatpush1.msra.mxu0 0.0
          %685 = vmatprep.subr.mxu0 0.0
          %686 = vmatpush1.msra.mxu0 0.0
          %687 = vmatprep.subr.mxu0 0.0
          %688 = vmatpush1.msra.mxu0 0.0
          %689 = vmatprep.subr.mxu0 0.0
          %690 = vmatpush1.msra.mxu0 0.0
          %691 = vmatprep.subr.mxu0 0.0
          %692 = vmatpush1.msra.mxu0 0.0
          %693 = vmatprep.subr.mxu0 0.0
          %694 = vmatpush1.msra.mxu0 0.0
          %695 = vmatprep.subr.mxu0 0.0
          %696 = vmatpush1.msra.mxu0 0.0
          %697 = vmatprep.subr.mxu0 0.0
          %698 = vmatpush1.msra.mxu0 0.0
          %699 = vmatprep.subr.mxu0 0.0
          %700 = vmatpush1.msra.mxu0 0.0
          %701 = vmatprep.subr.mxu0 0.0
          %702 = vmatpush1.msra.mxu0 0.0
          %703 = vmatprep.subr.mxu0 0.0
          %704 = vmatpush1.msra.mxu0 0.0
          %705 = vmatprep.subr.mxu0 0.0
          %706 = vmatpush1.msra.mxu0 0.0
          %707 = vmatprep.subr.mxu0 0.0
          %708 = vmatpush1.msra.mxu0 0.0
          %709 = vmatprep.subr.mxu0 0.0
          %710 = vmatpush1.msra.mxu0 0.0
          %711 = vmatprep.subr.mxu0 0.0
          %712 = vmatpush1.msra.mxu0 0.0
          %713 = vmatprep.subr.mxu0 0.0
          %714 = vmatpush1.msra.mxu0 0.0
          %715 = vmatprep.subr.mxu0 0.0
          %716 = vmatpush1.msra.mxu0 0.0
          %717 = vmatprep.subr.mxu0 0.0
          %718 = vmatpush1.msra.mxu0 0.0
          %719 = vmatprep.subr.mxu0 0.0
          %720 = vmatpush1.msra.mxu0 0.0
          %721 = vmatprep.subr.mxu0 0.0
          %722 = vmatpush1.msra.mxu0 0.0
          %723 = vmatprep.subr.mxu0 0.0
          %724 = vmatpush1.msra.mxu0 0.0
          %725 = vmatprep.subr.mxu0 0.0
          %726 = vmatpush1.msra.mxu0 0.0
          %727 = vmatprep.subr.mxu0 0.0
          %728 = vmatpush1.msra.mxu0 0.0
          %729 = vmatprep.mubr.f32.mxu0 0.0
          %730 = vmatmul.mubr.f32.gmra.mrb[0].mxu0 %v654
          %v731 = vpop.f32.mrb[0].mxu0
          %v732 = vadd.f32 %v648, %v731
          %v733 = vpop.f32.mrb[0].mxu0
          %734 = vmatprep.mubr.f32.mxu0 0.0
          %735 = vmatmul.mubr.f32.gmra.mrb[0].mxu0 %v657
          %v736 = vpop.f32.mrb[0].mxu0
          %v737 = vadd.f32 %v649, %v736
          %v738 = vpop.f32.mrb[0].mxu0
          %739 = vmatprep.mubr.f32.mxu0 0.0
          %740 = vmatmul.mubr.f32.gmra.mrb[0].mxu0 %v660
          %v741 = vpop.f32.mrb[0].mxu0
          %v742 = vadd.f32 %v650, %v741
          %v743 = vpop.f32.mrb[0].mxu0
          %744 = vmatprep.mubr.f32.mxu0 0.0
          %745 = vmatmul.mubr.f32.gmra.mrb[0].mxu0 %v663
          %v746 = vpop.f32.mrb[0].mxu0
          %v747 = vadd.f32 %v651, %v746
          %v748 = vpop.f32.mrb[0].mxu0
          %749 = vdwg.mxu0
          %v750 = vld [vmem:[%s5] sm:$0x1]
          %v752 = vlaneseq
          %v753 = vshrl.u32 %v752, 7
          %v754 = vsub.s32 0, %v753
          %v755 = vrot.slane %v750, %v754
          %v757 = vadd.f32 %v732, %v755
          %v758 = vadd.f32 %v737, %v755
          %v759 = vadd.f32 %v742, %v755
          %v760 = vadd.f32 %v747, %v755
          %761 = vst [vmem:[%s327] sm:$0xff] %v757
          %762 = vst [vmem:[%s327 + $0x8] sm:$0xff] %v758
          %763 = vst [vmem:[%s327 + $0x10] sm:$0xff] %v759
          %764 = vst [vmem:[%s327 + $0x18] sm:$0xff] %v760
        $region60: #{tpu_custom_call.1} parent=43 // pred_fallthru
          _
        %s765 = sand.u32 %s185, 1
        %s766 = scalar_lea.sflag [#allocation5], %s765
        %s767 = sand.u32 %s185, 1
        %s768 = smul.addr %s767, 32
        %s769 = scalar_lea.vmem [#allocation8], %s768
        // Predicated region
        $region61: #{tpu_custom_call.1} parent=43 // pred_check
          %p770 = pneg %p195
        $region62: #{tpu_custom_call.1} parent=43 // pred_check_branch
          %772 = sbr.rel (%p770) target = $region64
        $region63: #{tpu_custom_call.1} parent=43 // pred_region
          %s773 = smul.u32 4, %s26
          %s775 = ssub.s32 512, 512
          %776 = vsyncadd %s766, %s775
          %s777 = smul.addr %s773, 128
          %s778 = scalar_lea.hbm %s6, %s777
          %s779 = sshll.u32 %s769, 4
          %s780 = int_to_ptr.vmem [resolvable:$true] %s779
          %785 = dma.vmem_to_hbm [thread:$0]  %s780, 512, %s778, %s766, 128, 128, 8
        $region64: #{tpu_custom_call.1} parent=43 // pred_fallthru
          _
      $region44: #{tpu_custom_call.1} parent=5 // pred_fallthru
        _
      %p786 = scmp.le.s32.totalorder 2, %s17
      // Predicated region
      $region65: #{tpu_custom_call.1} parent=5 // pred_check
        %p787 = pneg %p786
      $region66: #{tpu_custom_call.1} parent=5 // pred_check_branch
        %789 = sbr.rel (%p787) target = $region68
      $region67: #{tpu_custom_call.1} parent=5 // pred_region
        %s790 = ssub.s32 %s17, 2
        // Predicated region
        $region69: #{tpu_custom_call.1} parent=67 // pred_check
          %p791 = pneg %p201
        $region70: #{tpu_custom_call.1} parent=67 // pred_check_branch
          %793 = sbr.rel (%p791) target = $region72
        $region71: #{tpu_custom_call.1} parent=67 // pred_region
          %s794 = sand.u32 %s186, 1
          %s795 = scalar_lea.sflag [#allocation5], %s794
          %s796 = sand.u32 %s186, 1
          %s797 = smul.addr %s796, 32
          %s798 = scalar_lea.vmem [#allocation8], %s797
          %799 = dma.done %s795, 512
        $region72: #{tpu_custom_call.1} parent=67 // pred_fallthru
          _
      $region68: #{tpu_custom_call.1} parent=5 // pred_fallthru
        _
    $region6: #{tpu_custom_call.1} parent=1 // loop_footer
      %s21 = sadd.s32 1, %s17
    $region7: #{tpu_custom_call.1} parent=1 // loop_footer_branch
      %16 = sbr.rel target = $region3
    $region8: #{tpu_custom_call.1} parent=1 // loop_exit
      _
    %800 = vsyncpa [#allocation4], 1
    %s801 = scalar_lea.sflag [#allocation4], 1
    %802 = vsyncpa %s801, 1
    %803 = vsyncpa [#allocation7], 1
    %804 = vsyncpa [#allocation5], 1
    %s805 = scalar_lea.sflag [#allocation5], 1
    %806 = vsyncpa %s805, 1

</llo_original>
